<compile_context>
chip_gen: v7x
topology: tpu7x:2x2x1
jax: 0.10.0
libtpu: 0.0.40
codegen_flags: <defaults>
</compile_context>

<pallas_src>
import jax
import jax.numpy as jnp
from jax.experimental import pallas as pl
from jax.experimental.pallas import tpu as pltpu


def _fourier_pe_kernel(x_ref, w_ref, out_ref):
    # x_ref  : (tile_rows, Km)      packed position rows (Km = PACK*M)
    # w_ref  : (Km, L)              block-diagonal, repeat-interleaved weight
    # out_ref: (2, tile_rows, L)    fused [cos; sin] lane-dense output tile
    x = x_ref[...]
    w = w_ref[...]
    km = x.shape[1]

    if km <= 16:
        # Unrolled VPU broadcast-FMA: a K<=16 contraction would leave the MXU
        # ~3% utilised plus per-tile weight push; keep it on the VALU.
        proj = x[:, 0:1] * w[0:1, :]
        for k in range(1, km):
            proj = proj + x[:, k:k + 1] * w[k:k + 1, :]
    else:
        proj = jnp.dot(x, w, preferred_element_type=jnp.float32)

    # Weight rows were repeat-interleaved (and block-diagonalised) in the
    # wrapper, so cos/sin of `proj` already ARE the repeat_interleave(2, -1)
    # of the PyTorch module, laid out PACK rows per 128-lane row.
    out_ref[0] = jnp.cos(proj).astype(out_ref.dtype)
    out_ref[1] = jnp.sin(proj).astype(out_ref.dtype)


def learnable_fourier_pe(x, Wr, *, tile_n=8192, out_dtype=jnp.float32):
    """x: (B, N, M) float32; Wr: (F_half, M) float32 -> (2, B, 1, N, 2*F_half)."""
    B, N, M = x.shape
    F_half = Wr.shape[0]
    F_dim = 2 * F_half
    BN = B * N

    # Lane packing factor: PACK consecutive rows share one 128-lane row so the
    # EUP (cos/sin), VALU and the stores run at full lane utilisation.
    PACK = 128 // F_dim if (F_dim <= 128 and 128 % F_dim == 0) else 1
    L = PACK * F_dim          # kernel output lane width (128 when packed)
    Km = PACK * M             # packed contraction width

    # Pad rows only to a multiple of PACK (<= PACK-1 rows).  The grid itself
    # handles the non-divisible last tile, so no tile-sized pad/slice round trip.
    BN_p = pl.cdiv(BN, PACK) * PACK
    x_flat = x.reshape(BN, M).astype(jnp.float32)
    if BN_p != BN:
        x_flat = jnp.pad(x_flat, ((0, BN_p - BN), (0, 0)))
    R = BN_p // PACK
    x_packed = x_flat.reshape(R, Km)   # row r holds rows [r*PACK, (r+1)*PACK)

    # repeat_interleave(2, dim=-1) commutes with cos/sin and with the linear
    # projection: pre-repeat the weight rows once, then block-diagonalise so
    # each lane-group g computes its own row's features.  No in-kernel
    # cross-lane shuffles needed.
    Wt = jnp.repeat(Wr.astype(jnp.float32), 2, axis=0).T          # (M, F_dim)
    W_bd = jnp.kron(jnp.eye(PACK, dtype=jnp.float32), Wt)         # (Km, L)

    # Tile size in packed rows (multiple of 8 sublanes).  Clamp so there are
    # at least 2 grid steps when the input is big enough -> both TCs busy on
    # v7x under dimension_semantics=("parallel",).
    tile_rows = max(8, (tile_n // PACK // 8) * 8)
    tile_rows = min(tile_rows, max(8, 8 * pl.cdiv(pl.cdiv(R, 2), 8)))
    grid = (pl.cdiv(R, tile_rows),)

    out_bytes = jnp.dtype(out_dtype).itemsize
    cost = pl.CostEstimate(
        flops=2 * BN_p * M * F_dim,
        transcendentals=2 * BN_p * F_dim,
        bytes_accessed=R * Km * 4 + Km * L * 4 + 2 * R * L * out_bytes,
    )

    out = pl.pallas_call(
        _fourier_pe_kernel,
        grid=grid,
        in_specs=[
            pl.BlockSpec((tile_rows, Km), lambda i: (i, 0)),   # packed x rows
            pl.BlockSpec((Km, L), lambda i: (0, 0)),           # resident weight
        ],
        out_specs=pl.BlockSpec((2, tile_rows, L), lambda i: (0, i, 0)),
        out_shape=jax.ShapeDtypeStruct((2, R, L), out_dtype),
        compiler_params=pltpu.CompilerParams(
            dimension_semantics=("parallel",),
            vmem_limit_bytes=32 * 1024 * 1024,
        ),
        cost_estimate=cost,
    )(x_packed, W_bd)

    # Free row-major unpack: (2, R, PACK*F_dim) -> (2, BN_p, F_dim).
    out = out.reshape(2, BN_p, F_dim)
    if BN_p != BN:
        out = out[:, :BN, :]           # at most PACK-1 padded rows dropped
    return out.reshape(2, B, 1, N, F_dim)


def _reference(x, Wr):
    proj = jnp.einsum("bnm,fm->bnf", x, Wr)
    emb = jnp.stack([jnp.cos(proj), jnp.sin(proj)], axis=0)[:, :, None, :, :]
    return jnp.repeat(emb, 2, axis=-1)


if __name__ == "__main__":
    # Module config: M=2 (keypoint coords), dim=32 -> F_dim=32, F_half=16, gamma=1.0
    M, dim, gamma = 2, 32, 1.0
    F_dim = dim
    F_half = F_dim // 2

    # Small demo shapes; B*N = 154 is NOT a multiple of PACK or the tile size,
    # so both the minimal row padding and the partial-last-block path are hit.
    B, N = 2, 77

    key = jax.random.PRNGKey(0)
    k_x, k_w = jax.random.split(key)
    x = jax.random.normal(k_x, (B, N, M), dtype=jnp.float32)
    # nn.init.normal_(Wr.weight, mean=0, std=gamma**-2); weight shape (F_half, M)
    Wr = (gamma ** -2) * jax.random.normal(k_w, (F_half, M), dtype=jnp.float32)

    out = learnable_fourier_pe(x, Wr)
    out = jax.block_until_ready(out)

    ref = _reference(x, Wr)
    assert out.shape == (2, B, 1, N, F_dim), out.shape
    assert jnp.allclose(out, ref, atol=1e-5, rtol=1e-5)

    print("KERNEL_OK")
</pallas_src>

<mosaic_0001>
module attributes {stable_mosaic.version = 11 : i64} {
  func.func @_fourier_pe_kernel(%arg0: i32, %arg1: memref<24x8xf32, #tpu.memory_space<vmem>>, %arg2: memref<8x128xf32, #tpu.memory_space<vmem>>, %arg3: memref<2x24x128xf32, #tpu.memory_space<vmem>>) attributes {dimension_semantics = [#tpu.dimension_semantics<parallel>], iteration_bounds = array<i64: 2>, scalar_prefetch = 0 : i64, scratch_operands = 0 : i64, tpu.core_type = #tpu.core_type<tc>, window_params = [{transform_indices = @transform_0, window_bounds = array<i64: 24, 8>}, {pipeline_mode = #tpu.pipeline_mode<synchronous>, transform_indices = @transform_1, window_bounds = array<i64: 8, 128>}, {transform_indices = @transform_2, window_bounds = array<i64: 2, 24, 128>}]} {
    %c0 = arith.constant 0 : index
    %c0_0 = arith.constant 0 : index
    %0 = vector.load %arg1[%c0, %c0_0] : memref<24x8xf32, #tpu.memory_space<vmem>>, vector<24x8xf32>
    %c0_1 = arith.constant 0 : index
    %c0_2 = arith.constant 0 : index
    %1 = vector.load %arg2[%c0_1, %c0_2] : memref<8x128xf32, #tpu.memory_space<vmem>>, vector<8x128xf32>
    %2 = vector.extract_strided_slice %0 {offsets = [0, 0], sizes = [24, 1], strides = [1, 1]} : vector<24x8xf32> to vector<24x1xf32>
    %3 = vector.extract_strided_slice %1 {offsets = [0, 0], sizes = [1, 128], strides = [1, 1]} : vector<8x128xf32> to vector<1x128xf32>
    %4 = vector.broadcast %2 : vector<24x1xf32> to vector<24x128xf32>
    %5 = vector.broadcast %3 : vector<1x128xf32> to vector<24x128xf32>
    %6 = arith.mulf %4, %5 : vector<24x128xf32>
    %7 = vector.extract_strided_slice %0 {offsets = [0, 1], sizes = [24, 1], strides = [1, 1]} : vector<24x8xf32> to vector<24x1xf32>
    %8 = vector.extract_strided_slice %1 {offsets = [1, 0], sizes = [1, 128], strides = [1, 1]} : vector<8x128xf32> to vector<1x128xf32>
    %9 = vector.broadcast %7 : vector<24x1xf32> to vector<24x128xf32>
    %10 = vector.broadcast %8 : vector<1x128xf32> to vector<24x128xf32>
    %11 = arith.mulf %9, %10 : vector<24x128xf32>
    %12 = arith.addf %6, %11 : vector<24x128xf32>
    %13 = vector.extract_strided_slice %0 {offsets = [0, 2], sizes = [24, 1], strides = [1, 1]} : vector<24x8xf32> to vector<24x1xf32>
    %14 = vector.extract_strided_slice %1 {offsets = [2, 0], sizes = [1, 128], strides = [1, 1]} : vector<8x128xf32> to vector<1x128xf32>
    %15 = vector.broadcast %13 : vector<24x1xf32> to vector<24x128xf32>
    %16 = vector.broadcast %14 : vector<1x128xf32> to vector<24x128xf32>
    %17 = arith.mulf %15, %16 : vector<24x128xf32>
    %18 = arith.addf %12, %17 : vector<24x128xf32>
    %19 = vector.extract_strided_slice %0 {offsets = [0, 3], sizes = [24, 1], strides = [1, 1]} : vector<24x8xf32> to vector<24x1xf32>
    %20 = vector.extract_strided_slice %1 {offsets = [3, 0], sizes = [1, 128], strides = [1, 1]} : vector<8x128xf32> to vector<1x128xf32>
    %21 = vector.broadcast %19 : vector<24x1xf32> to vector<24x128xf32>
    %22 = vector.broadcast %20 : vector<1x128xf32> to vector<24x128xf32>
    %23 = arith.mulf %21, %22 : vector<24x128xf32>
    %24 = arith.addf %18, %23 : vector<24x128xf32>
    %25 = vector.extract_strided_slice %0 {offsets = [0, 4], sizes = [24, 1], strides = [1, 1]} : vector<24x8xf32> to vector<24x1xf32>
    %26 = vector.extract_strided_slice %1 {offsets = [4, 0], sizes = [1, 128], strides = [1, 1]} : vector<8x128xf32> to vector<1x128xf32>
    %27 = vector.broadcast %25 : vector<24x1xf32> to vector<24x128xf32>
    %28 = vector.broadcast %26 : vector<1x128xf32> to vector<24x128xf32>
    %29 = arith.mulf %27, %28 : vector<24x128xf32>
    %30 = arith.addf %24, %29 : vector<24x128xf32>
    %31 = vector.extract_strided_slice %0 {offsets = [0, 5], sizes = [24, 1], strides = [1, 1]} : vector<24x8xf32> to vector<24x1xf32>
    %32 = vector.extract_strided_slice %1 {offsets = [5, 0], sizes = [1, 128], strides = [1, 1]} : vector<8x128xf32> to vector<1x128xf32>
    %33 = vector.broadcast %31 : vector<24x1xf32> to vector<24x128xf32>
    %34 = vector.broadcast %32 : vector<1x128xf32> to vector<24x128xf32>
    %35 = arith.mulf %33, %34 : vector<24x128xf32>
    %36 = arith.addf %30, %35 : vector<24x128xf32>
    %37 = vector.extract_strided_slice %0 {offsets = [0, 6], sizes = [24, 1], strides = [1, 1]} : vector<24x8xf32> to vector<24x1xf32>
    %38 = vector.extract_strided_slice %1 {offsets = [6, 0], sizes = [1, 128], strides = [1, 1]} : vector<8x128xf32> to vector<1x128xf32>
    %39 = vector.broadcast %37 : vector<24x1xf32> to vector<24x128xf32>
    %40 = vector.broadcast %38 : vector<1x128xf32> to vector<24x128xf32>
    %41 = arith.mulf %39, %40 : vector<24x128xf32>
    %42 = arith.addf %36, %41 : vector<24x128xf32>
    %43 = vector.extract_strided_slice %0 {offsets = [0, 7], sizes = [24, 1], strides = [1, 1]} : vector<24x8xf32> to vector<24x1xf32>
    %44 = vector.extract_strided_slice %1 {offsets = [7, 0], sizes = [1, 128], strides = [1, 1]} : vector<8x128xf32> to vector<1x128xf32>
    %45 = vector.broadcast %43 : vector<24x1xf32> to vector<24x128xf32>
    %46 = vector.broadcast %44 : vector<1x128xf32> to vector<24x128xf32>
    %47 = arith.mulf %45, %46 : vector<24x128xf32>
    %48 = arith.addf %42, %47 : vector<24x128xf32>
    %49 = math.cos %48 : vector<24x128xf32>
    %c0_3 = arith.constant 0 : index
    %c0_4 = arith.constant 0 : index
    %c0_5 = arith.constant 0 : index
    %50 = vector.load %arg3[%c0_3, %c0_4, %c0_5] : memref<2x24x128xf32, #tpu.memory_space<vmem>>, vector<1x24x128xf32>
    %51 = vector.shape_cast %50 : vector<1x24x128xf32> to vector<24x128xf32>
    %52 = vector.shape_cast %49 : vector<24x128xf32> to vector<1x24x128xf32>
    tpu.vector_store %arg3[%c0_3, %c0_4, %c0_5], %52 {strides = array<i32>} : memref<2x24x128xf32, #tpu.memory_space<vmem>>, vector<1x24x128xf32>,
    %53 = math.sin %48 : vector<24x128xf32>
    %c1 = arith.constant 1 : index
    %c0_6 = arith.constant 0 : index
    %c0_7 = arith.constant 0 : index
    %54 = vector.load %arg3[%c1, %c0_6, %c0_7] : memref<2x24x128xf32, #tpu.memory_space<vmem>>, vector<1x24x128xf32>
    %55 = vector.shape_cast %54 : vector<1x24x128xf32> to vector<24x128xf32>
    %56 = vector.shape_cast %53 : vector<24x128xf32> to vector<1x24x128xf32>
    tpu.vector_store %arg3[%c1, %c0_6, %c0_7], %56 {strides = array<i32>} : memref<2x24x128xf32, #tpu.memory_space<vmem>>, vector<1x24x128xf32>,
    return
  }
  func.func @transform_0(%arg0: i32) -> (i32, i32) {
    %c0_i32 = arith.constant 0 : i32
    %c0_i32_0 = arith.constant 0 : i32
    return %arg0, %c0_i32 : i32, i32
  }
  func.func @transform_1(%arg0: i32) -> (i32, i32) {
    %c0_i32 = arith.constant 0 : i32
    %c0_i32_0 = arith.constant 0 : i32
    %c0_i32_1 = arith.constant 0 : i32
    return %c0_i32, %c0_i32_0 : i32, i32
  }
  func.func @transform_2(%arg0: i32) -> (i32, i32, i32) {
    %c0_i32 = arith.constant 0 : i32
    %c0_i32_0 = arith.constant 0 : i32
    %c0_i32_1 = arith.constant 0 : i32
    return %c0_i32, %arg0, %c0_i32_0 : i32, i32, i32
  }
}

</mosaic_0001>

<llo_original>
// kernel: tpu_custom_call.1
$region0: #{tpu_custom_call.1}
  #allocation0 [shape = 'u32[]', space=smem, size = 0x4, offset = 0x4, fixed_abs, tag = 'smem constant byte address 0x4 - core index']
  #allocation1 [shape = 'u32[144,128]{1,0:T(1,128)}', space=vmem, size = 0x12000, scoped, tag = 'internal scratch']
  %s0 = inlined_call_operand.vmem [shape: f32[39,8], index: 0, kind: input, shape index: {}]
  %s1 = inlined_call_operand.vmem [shape: f32[8,128], index: 1, kind: input, shape index: {}]
  %s2 = inlined_call_operand.vmem [shape: f32[2,39,128], index: 2, kind: output, shape index: {}]
  %s3 = sld [smem:[#allocation0]]
  $region89: #{tpu_custom_call.1} parent=0
    _
  %s5 = ssub.s32 1, %s3
  %s6 = scalar_select 0, %s5, %s3
  $region1: #{tpu_custom_call.1} parent=0
    #allocation2 [shape = 'u8[49152]{0}', space=vmem, size = 0xc000, scoped, tag = 'output window, operand 0']
    loop: start=0, step=1, limit=4
    $region2: #{tpu_custom_call.1} parent=1 // loop_pre_header
      _
    $region3: #{tpu_custom_call.1} parent=1 // loop_header
      %s8 = sphi 0, %s12
      %p9 = scmp.ge.s32.totalorder %s8, 4
      %s18 = sphi 0, %s20
      %s21 = sphi 0, %s18
      %s22 = sphi 0, %s21
      %s38 = sphi 0, %s22
      %s42 = sphi 0, %s42
      %s44 = sphi 0, %s42
      %s45 = sphi 0, %s44
      %s59 = sphi 0, %s45
      %s65 = sphi 0, %s67
      %s68 = sphi 0, %s65
      %s69 = sphi 0, %s68
      %s85 = sphi 0, %s69
    $region4: #{tpu_custom_call.1} parent=1 // loop_header_branch
      %11 = sbr.rel (%p9) target = $region8
    $region5: #{tpu_custom_call.1} parent=1 // loop_body
      %s13 = ssub.s32 %s8, 1
      %s14 = ssub.s32 %s8, 2
      %s15 = sadd.s32 %s8, 1
      %s16 = ssub.s32 %s8, %s15
      %p17 = scmp.eq.s32.totalorder %s16, 0
      %s19 = sadd.s32 %s18, 1
      %s20 = scalar_select %p17, %s18, %s19
      %p23 = pneg %p17
      %p24 = scmp.eq.s32.totalorder %s8, 1
      %p25 = por %p23, %p24
      %p26 = scmp.ne.s32.totalorder %s18, %s21
      %p27 = scmp.eq.s32.totalorder %s8, 0
      %p28 = por %p26, %p27
      %p29 = scmp.ne.s32.totalorder %s18, %s21
      %p30 = scmp.eq.s32.totalorder %s13, 1
      %p31 = por %p29, %p30
      %p32 = scmp.ne.s32.totalorder %s21, %s22
      %p33 = scmp.eq.s32.totalorder %s13, 0
      %p34 = por %p32, %p33
      %p35 = scmp.ne.s32.totalorder %s21, %s22
      %p36 = scmp.eq.s32.totalorder %s14, 1
      %p37 = por %p35, %p36
      %p39 = scmp.ne.s32.totalorder %s22, %s38
      %p40 = scmp.eq.s32.totalorder %s14, 0
      %p41 = por %p39, %p40
      %s43 = sadd.s32 %s42, 1
      %p46 = scmp.eq.s32.totalorder %s8, 1
      %p47 = scmp.ne.s32.totalorder %s42, %s44
      %p48 = scmp.eq.s32.totalorder %s8, 0
      %p49 = por %p47, %p48
      %p50 = scmp.ne.s32.totalorder %s42, %s44
      %p51 = scmp.eq.s32.totalorder %s13, 1
      %p52 = por %p50, %p51
      %p53 = scmp.ne.s32.totalorder %s44, %s45
      %p54 = scmp.eq.s32.totalorder %s13, 0
      %p55 = por %p53, %p54
      %p56 = scmp.ne.s32.totalorder %s44, %s45
      %p57 = scmp.eq.s32.totalorder %s14, 1
      %p58 = por %p56, %p57
      %p60 = scmp.ne.s32.totalorder %s45, %s59
      %p61 = scmp.eq.s32.totalorder %s14, 0
      %p62 = por %p60, %p61
      %s63 = ssub.s32 %s8, %s15
      %p64 = scmp.eq.s32.totalorder %s63, 0
      %s66 = sadd.s32 %s65, 1
      %s67 = scalar_select %p64, %s65, %s66
      %p70 = pneg %p64
      %p71 = scmp.eq.s32.totalorder %s8, 1
      %p72 = por %p70, %p71
      %p73 = scmp.ne.s32.totalorder %s65, %s68
      %p74 = scmp.eq.s32.totalorder %s8, 0
      %p75 = por %p73, %p74
      %p76 = scmp.ne.s32.totalorder %s65, %s68
      %p77 = scmp.eq.s32.totalorder %s13, 1
      %p78 = por %p76, %p77
      %p79 = scmp.ne.s32.totalorder %s68, %s69
      %p80 = scmp.eq.s32.totalorder %s13, 0
      %p81 = por %p79, %p80
      %p82 = scmp.ne.s32.totalorder %s68, %s69
      %p83 = scmp.eq.s32.totalorder %s14, 1
      %p84 = por %p82, %p83
      %p86 = scmp.ne.s32.totalorder %s69, %s85
      %p87 = scmp.eq.s32.totalorder %s14, 0
      %p88 = por %p86, %p87
      %p89 = scmp.le.s32.totalorder 1, %s8
      %p90 = scmp.lt.s32.totalorder %s8, 3
      %p91 = pnand %p89, %p90
      %p92 = pneg %p91
      // Predicated region
      $region9: #{tpu_custom_call.1} parent=5 // pred_check
        _
      $region10: #{tpu_custom_call.1} parent=5 // pred_check_branch
        %94 = sbr.rel (%p91) target = $region12
      $region11: #{tpu_custom_call.1} parent=5 // pred_region
        %s95 = ssub.s32 %s8, 1
        // Predicated region
        $region13: #{tpu_custom_call.1} parent=11 // pred_check
          %p96 = pneg %p55
        $region14: #{tpu_custom_call.1} parent=11 // pred_check_branch
          %98 = sbr.rel (%p96) target = $region16
        $region15: #{tpu_custom_call.1} parent=11 // pred_region
          _
        $region16: #{tpu_custom_call.1} parent=11 // pred_fallthru
          _
      $region12: #{tpu_custom_call.1} parent=5 // pred_fallthru
        _
      %p99 = scmp.lt.s32.totalorder %s8, 2
      // Predicated region
      $region17: #{tpu_custom_call.1} parent=5 // pred_check
        %p100 = pneg %p99
      $region18: #{tpu_custom_call.1} parent=5 // pred_check_branch
        %102 = sbr.rel (%p100) target = $region20
      $region19: #{tpu_custom_call.1} parent=5 // pred_region
        // Predicated region
        $region21: #{tpu_custom_call.1} parent=19 // pred_check
          %p103 = pneg %p28
        $region22: #{tpu_custom_call.1} parent=19 // pred_check_branch
          %105 = sbr.rel (%p103) target = $region24
        $region23: #{tpu_custom_call.1} parent=19 // pred_region
          %s106 = smul.u32 3, %s8
          %s107 = ssub.s32 5, %s106
          %p108 = scmp.lt.s32.totalorder %s107, 3
          %s109 = scalar_select %p108, %s107, 3
          %s110 = smul.u32 128, %s109
          %p111 = scmp.lt.s32.totalorder %s106, 4
          %s112 = scalar_select %p111, %s106, 4
          %s113 = smul.addr %s112, 8
          %s114 = scalar_lea.vmem %s0, %s113
          %s115 = smul.u32 3, %s8
          %s116 = ssub.s32 5, %s115
          %p117 = scmp.lt.s32.totalorder %s116, 3
          %s118 = scalar_select %p117, %s116, 3
          %s119 = smul.u32 128, %s118
        $region24: #{tpu_custom_call.1} parent=19 // pred_fallthru
          _
      $region20: #{tpu_custom_call.1} parent=5 // pred_fallthru
        _
      %p120 = scmp.le.s32.totalorder 1, %s8
      %p121 = scmp.lt.s32.totalorder %s8, 3
      %p122 = pnand %p120, %p121
      %p123 = pneg %p122
      // Predicated region
      $region25: #{tpu_custom_call.1} parent=5 // pred_check
        _
      $region26: #{tpu_custom_call.1} parent=5 // pred_check_branch
        %125 = sbr.rel (%p122) target = $region28
      $region27: #{tpu_custom_call.1} parent=5 // pred_region
        %s126 = ssub.s32 %s8, 1
        %s127 = smul.u32 3, %s13
        %s128 = ssub.s32 5, %s127
        %p129 = scmp.lt.s32.totalorder %s128, 3
        %s130 = scalar_select %p129, %s128, 3
        %s131 = smul.u32 128, %s130
        %p132 = scmp.lt.s32.totalorder %s127, 4
        %s133 = scalar_select %p132, %s127, 4
        %s134 = smul.addr %s133, 8
        %s135 = scalar_lea.vmem %s0, %s134
        %p136 = pneg %p34
        %p137 = pneg %p31
        %p138 = pneg %p55
        %p139 = pneg %p52
        %p140 = pneg %p81
        %p141 = pneg %p78
        %s142 = sand.u32 %s68, 1
        %s143 = sand.u32 %s68, 1
        %s144 = smul.addr %s143, 48
        %s145 = scalar_lea.vmem [#allocation2], %s144
        %s146 = smul.u32 3, %s13
        %s147 = ssub.s32 5, %s146
        %p148 = scmp.lt.s32.totalorder %s147, 3
        %s149 = scalar_select %p148, %s147, 3
        %s150 = smul.u32 128, %s149
        %p151 = scmp.lt.s32.totalorder %s146, 4
        %s152 = scalar_select %p151, %s146, 4
        %s153 = smul.addr %s152, 8
        %s154 = scalar_lea.vmem %s0, %s153
        %s155 = smul.u32 3, %s13
        %s156 = ssub.s32 5, %s155
        %p157 = scmp.lt.s32.totalorder %s156, 3
        %s158 = scalar_select %p157, %s156, 3
        %s159 = smul.u32 128, %s158
        %s160 = smul.u32 3, %s13
        %s161 = ssub.s32 5, %s160
        %p162 = scmp.lt.s32.totalorder %s161, 3
        %s163 = scalar_select %p162, %s161, 3
        %s164 = smul.u32 256, %s163
        %v165 = vld [vmem:[%s154] sm:$0xff]
        %v166 = vld [vmem:[%s154 + $0x8] sm:$0xff]
        %v167 = vld [vmem:[%s154 + $0x10] sm:$0xff]
        %v168 = vld [vmem:[%s1] sm:$0xff]
        %170 = vset.pattern.permute.xlu0 0
        %171 = vperm.xlu0 %170, %v165
        %v172 = vpop.permute.xlu0 %171
        %175 = vset.pattern.permute.xlu0 0
        %176 = vperm.xlu0 %175, %v166
        %v177 = vpop.permute.xlu0 %176
        %180 = vset.pattern.permute.xlu0 0
        %181 = vperm.xlu0 %180, %v167
        %v182 = vpop.permute.xlu0 %181
        %v184 = vlaneseq
        %v185 = vshrl.u32 %v184, 7
        %v186 = vsub.s32 0, %v185
        %v187 = vrot.slane %v168, %v186
        %v188 = vmul.f32 %v172, %v187
        %v189 = vmul.f32 %v177, %v187
        %v190 = vmul.f32 %v182, %v187
        %191 = vset.pattern.permute.xlu0 1
        %192 = vperm.xlu0 %191, %v165
        %v193 = vpop.permute.xlu0 %192
        %195 = vset.pattern.permute.xlu0 1
        %196 = vperm.xlu0 %195, %v166
        %v197 = vpop.permute.xlu0 %196
        %199 = vset.pattern.permute.xlu0 1
        %200 = vperm.xlu0 %199, %v167
        %v201 = vpop.permute.xlu0 %200
        %v203 = vlaneseq
        %v204 = vshrl.u32 %v203, 7
        %v205 = vsub.s32 1, %v204
        %v206 = vrot.slane %v168, %v205
        %v207 = vmul.f32 %v193, %v206
        %v208 = vmul.f32 %v197, %v206
        %v209 = vmul.f32 %v201, %v206
        %v210 = vadd.f32 %v188, %v207
        %v211 = vadd.f32 %v189, %v208
        %v212 = vadd.f32 %v190, %v209
        %213 = vset.pattern.permute.xlu0 2
        %214 = vperm.xlu0 %213, %v165
        %v215 = vpop.permute.xlu0 %214
        %217 = vset.pattern.permute.xlu0 2
        %218 = vperm.xlu0 %217, %v166
        %v219 = vpop.permute.xlu0 %218
        %221 = vset.pattern.permute.xlu0 2
        %222 = vperm.xlu0 %221, %v167
        %v223 = vpop.permute.xlu0 %222
        %v225 = vlaneseq
        %v226 = vshrl.u32 %v225, 7
        %v227 = vsub.s32 2, %v226
        %v228 = vrot.slane %v168, %v227
        %v229 = vmul.f32 %v215, %v228
        %v230 = vmul.f32 %v219, %v228
        %v231 = vmul.f32 %v223, %v228
        %v232 = vadd.f32 %v210, %v229
        %v233 = vadd.f32 %v211, %v230
        %v234 = vadd.f32 %v212, %v231
        %235 = vset.pattern.permute.xlu0 3
        %236 = vperm.xlu0 %235, %v165
        %v237 = vpop.permute.xlu0 %236
        %239 = vset.pattern.permute.xlu0 3
        %240 = vperm.xlu0 %239, %v166
        %v241 = vpop.permute.xlu0 %240
        %243 = vset.pattern.permute.xlu0 3
        %244 = vperm.xlu0 %243, %v167
        %v245 = vpop.permute.xlu0 %244
        %v247 = vlaneseq
        %v248 = vshrl.u32 %v247, 7
        %v249 = vsub.s32 3, %v248
        %v250 = vrot.slane %v168, %v249
        %v251 = vmul.f32 %v237, %v250
        %v252 = vmul.f32 %v241, %v250
        %v253 = vmul.f32 %v245, %v250
        %v254 = vadd.f32 %v232, %v251
        %v255 = vadd.f32 %v233, %v252
        %v256 = vadd.f32 %v234, %v253
        %257 = vset.pattern.permute.xlu0 4
        %258 = vperm.xlu0 %257, %v165
        %v259 = vpop.permute.xlu0 %258
        %261 = vset.pattern.permute.xlu0 4
        %262 = vperm.xlu0 %261, %v166
        %v263 = vpop.permute.xlu0 %262
        %265 = vset.pattern.permute.xlu0 4
        %266 = vperm.xlu0 %265, %v167
        %v267 = vpop.permute.xlu0 %266
        %v269 = vlaneseq
        %v270 = vshrl.u32 %v269, 7
        %v271 = vsub.s32 4, %v270
        %v272 = vrot.slane %v168, %v271
        %v273 = vmul.f32 %v259, %v272
        %v274 = vmul.f32 %v263, %v272
        %v275 = vmul.f32 %v267, %v272
        %v276 = vadd.f32 %v254, %v273
        %v277 = vadd.f32 %v255, %v274
        %v278 = vadd.f32 %v256, %v275
        %279 = vset.pattern.permute.xlu0 5
        %280 = vperm.xlu0 %279, %v165
        %v281 = vpop.permute.xlu0 %280
        %283 = vset.pattern.permute.xlu0 5
        %284 = vperm.xlu0 %283, %v166
        %v285 = vpop.permute.xlu0 %284
        %287 = vset.pattern.permute.xlu0 5
        %288 = vperm.xlu0 %287, %v167
        %v289 = vpop.permute.xlu0 %288
        %v291 = vlaneseq
        %v292 = vshrl.u32 %v291, 7
        %v293 = vsub.s32 5, %v292
        %v294 = vrot.slane %v168, %v293
        %v295 = vmul.f32 %v281, %v294
        %v296 = vmul.f32 %v285, %v294
        %v297 = vmul.f32 %v289, %v294
        %v298 = vadd.f32 %v276, %v295
        %v299 = vadd.f32 %v277, %v296
        %v300 = vadd.f32 %v278, %v297
        %301 = vset.pattern.permute.xlu0 6
        %302 = vperm.xlu0 %301, %v165
        %v303 = vpop.permute.xlu0 %302
        %305 = vset.pattern.permute.xlu0 6
        %306 = vperm.xlu0 %305, %v166
        %v307 = vpop.permute.xlu0 %306
        %309 = vset.pattern.permute.xlu0 6
        %310 = vperm.xlu0 %309, %v167
        %v311 = vpop.permute.xlu0 %310
        %v313 = vlaneseq
        %v314 = vshrl.u32 %v313, 7
        %v315 = vsub.s32 6, %v314
        %v316 = vrot.slane %v168, %v315
        %v317 = vmul.f32 %v303, %v316
        %v318 = vmul.f32 %v307, %v316
        %v319 = vmul.f32 %v311, %v316
        %v320 = vadd.f32 %v298, %v317
        %v321 = vadd.f32 %v299, %v318
        %v322 = vadd.f32 %v300, %v319
        %323 = vset.pattern.permute.xlu0 7
        %324 = vperm.xlu0 %323, %v165
        %v325 = vpop.permute.xlu0 %324
        %327 = vset.pattern.permute.xlu0 7
        %328 = vperm.xlu0 %327, %v166
        %v329 = vpop.permute.xlu0 %328
        %331 = vset.pattern.permute.xlu0 7
        %332 = vperm.xlu0 %331, %v167
        %v333 = vpop.permute.xlu0 %332
        %v335 = vlaneseq
        %v336 = vshrl.u32 %v335, 7
        %v337 = vsub.s32 7, %v336
        %v338 = vrot.slane %v168, %v337
        %v339 = vmul.f32 %v325, %v338
        %v340 = vmul.f32 %v329, %v338
        %v341 = vmul.f32 %v333, %v338
        %v342 = vadd.f32 %v320, %v339
        %v343 = vadd.f32 %v321, %v340
        %v344 = vadd.f32 %v322, %v341
        %v345 = vand.u32 2147483647, %v342
        %vm346 = vcmp.le.f32.partialorder %v345, 0.7853982
        %vm347 = vcmp.lt.s32.totalorder %v342, 0
        %v348 = vand.u32 %v342, 2139095040
        %v349 = vshrl.u32 %v348, 23
        %v350 = vsub.s32 %v349, 127
        %v351 = vand.u32 2147483647, %v342
        %v352 = vand.u32 %v351, 8388607
        %v353 = vor.u32 %v352, 8388608
        %v354 = vsub.s32 0, %v353
        %v355 = vadd.s32 %v350, 1
        %vm356 = vcmp.gt.s32.totalorder %v355, 0
        %v357 = vsel %vm356, %v355, 0
        %v358 = vshrl.u32 %v357, 5
        %v359 = vand.u32 %v357, 31
        %v360 = vsub.s32 32, %v359
        %v361 = vshrl.u32 683565275, %v360
        %v362 = vshll.u32 683565275, %v359
        %v363 = vshrl.u32 2475754826, %v360
        %v364 = vor.u32 %v362, %v363
        %v365 = vshll.u32 2475754826, %v359
        %v366 = vshrl.u32 2131351028, %v360
        %v367 = vor.u32 %v365, %v366
        %v368 = vshll.u32 2131351028, %v359
        %v369 = vshrl.u32 2102212464, %v360
        %v370 = vor.u32 %v368, %v369
        %v371 = vshll.u32 2102212464, %v359
        %v372 = vshrl.u32 920167782, %v360
        %v373 = vor.u32 %v371, %v372
        %v374 = vshll.u32 920167782, %v359
        %v375 = vshrl.u32 1326507024, %v360
        %v376 = vor.u32 %v374, %v375
        %vm377 = vcmp.lt.s32.totalorder %v358, 1
        %vm378 = vcmp.lt.s32.totalorder %v358, 2
        %vm379 = vcmp.lt.s32.totalorder %v358, 3
        %vm380 = vcmp.lt.s32.totalorder %v358, 4
        %v381 = vsel %vm377, %v361, %v364
        %v382 = vsel %vm380, %v370, 2102212464
        %v383 = vsel %vm379, %v367, %v382
        %v384 = vsel %vm378, %v381, %v383
        %v385 = vsel %vm377, %v364, %v367
        %v386 = vsel %vm380, %v373, 920167782
        %v387 = vsel %vm379, %v370, %v386
        %v388 = vsel %vm378, %v385, %v387
        %v389 = vsel %vm377, %v367, %v370
        %v390 = vsel %vm380, %v376, 1326507024
        %v391 = vsel %vm379, %v373, %v390
        %v392 = vsel %vm378, %v389, %v391
        %v393 = vshll.u32 %v353, 8
        %v394 = vmul.u32.u64.compose %v393, %v392
        %v395 = vextract.low.u32 %v394
        %v396 = vextract.high.u32 %v394
        %v397 = vmul.u32.u64.compose %v393, %v388
        %v398 = vextract.low.u32 %v397
        %v399 = vextract.high.u32 %v397
        %v400 = vmul.u32 %v393, %v384
        %v401 = vadd.s32 %v396, %v398
        %vm402 = vc.u32 %v396, %v398
        %v403 = vadd.s32 %v399, 1
        %v404 = vsel %vm402, %v403, %v399
        %v405 = vadd.s32 %v400, %v404
        %v406 = vadd.s32 %v405, 536870912
        %v407 = vshrl.u32 %v406, 30
        %v408 = vshll.u32 %v407, 30
        %v409 = vsub.s32 %v405, %v408
        %vm410 = vcmp.lt.s32.totalorder %v409, 0
        %v411 = vsub.s32 0, %v409
        %v412 = vsel %vm410, %v411, %v409
        %v413 = vclz %v412
        %v414 = vsub.s32 %v413, 2
        %vm415 = vcmp.gt.s32.totalorder 0, %v414
        %v416 = vsel %vm415, 0, %v414
        %v417 = vsub.s32 32, %v416
        %v418 = vshll.u32 %v409, %v416
        %v419 = vshrl.u32 %v401, %v417
        %v420 = vor.u32 %v418, %v419
        %v421 = vsub.s32 4294967266, %v416
        %v422 = vadd.s32 %v421, 127
        %v423 = vshll.u32 %v422, 23
        %v424 = vor.u32 4788187, %v423
        %v425 = vand.u32 2147483647, %v424
        %v427 = vcvt.s32.f32 %v420
        %v428 = vmul.f32 %v427, %v425
        %v429 = vxor.u32 %v428, 2147483648
        %v430 = vsel %vm347, %v429, %v428
        %v431 = vsub.s32 4, %v407
        %v432 = vsel %vm347, %v431, %v407
        %v433 = vsel %vm346, %v342, %v430
        %v434 = vsel %vm346, 0, %v432
        %v435 = vcosq.f32.pop %v433
        %v436 = vsinq.f32.pop %v433
        %vm437 = vweird.f32 %v342
        %v438 = vand.u32 %v434, 3
        %vm439 = vcmp.lt.s32.totalorder %v438, 2
        %vm440 = vcmp.eq.s32.totalorder %v438, 0
        %v441 = vxor.u32 %v436, 2147483648
        %v442 = vsel %vm440, %v435, %v441
        %vm443 = vcmp.eq.s32.totalorder %v438, 2
        %v444 = vxor.u32 %v435, 2147483648
        %v445 = vsel %vm443, %v444, %v436
        %v446 = vsel %vm439, %v442, %v445
        %v447 = vsel %vm437, nan, %v446
        %v448 = vand.u32 2147483647, %v343
        %vm449 = vcmp.le.f32.partialorder %v448, 0.7853982
        %vm450 = vcmp.lt.s32.totalorder %v343, 0
        %v451 = vand.u32 %v343, 2139095040
        %v452 = vshrl.u32 %v451, 23
        %v453 = vsub.s32 %v452, 127
        %v454 = vand.u32 2147483647, %v343
        %v455 = vand.u32 %v454, 8388607
        %v456 = vor.u32 %v455, 8388608
        %v457 = vsub.s32 0, %v456
        %v458 = vadd.s32 %v453, 1
        %vm459 = vcmp.gt.s32.totalorder %v458, 0
        %v460 = vsel %vm459, %v458, 0
        %v461 = vshrl.u32 %v460, 5
        %v462 = vand.u32 %v460, 31
        %v463 = vsub.s32 32, %v462
        %v464 = vshrl.u32 683565275, %v463
        %v465 = vshll.u32 683565275, %v462
        %v466 = vshrl.u32 2475754826, %v463
        %v467 = vor.u32 %v465, %v466
        %v468 = vshll.u32 2475754826, %v462
        %v469 = vshrl.u32 2131351028, %v463
        %v470 = vor.u32 %v468, %v469
        %v471 = vshll.u32 2131351028, %v462
        %v472 = vshrl.u32 2102212464, %v463
        %v473 = vor.u32 %v471, %v472
        %v474 = vshll.u32 2102212464, %v462
        %v475 = vshrl.u32 920167782, %v463
        %v476 = vor.u32 %v474, %v475
        %v477 = vshll.u32 920167782, %v462
        %v478 = vshrl.u32 1326507024, %v463
        %v479 = vor.u32 %v477, %v478
        %vm480 = vcmp.lt.s32.totalorder %v461, 1
        %vm481 = vcmp.lt.s32.totalorder %v461, 2
        %vm482 = vcmp.lt.s32.totalorder %v461, 3
        %vm483 = vcmp.lt.s32.totalorder %v461, 4
        %v484 = vsel %vm480, %v464, %v467
        %v485 = vsel %vm483, %v473, 2102212464
        %v486 = vsel %vm482, %v470, %v485
        %v487 = vsel %vm481, %v484, %v486
        %v488 = vsel %vm480, %v467, %v470
        %v489 = vsel %vm483, %v476, 920167782
        %v490 = vsel %vm482, %v473, %v489
        %v491 = vsel %vm481, %v488, %v490
        %v492 = vsel %vm480, %v470, %v473
        %v493 = vsel %vm483, %v479, 1326507024
        %v494 = vsel %vm482, %v476, %v493
        %v495 = vsel %vm481, %v492, %v494
        %v496 = vshll.u32 %v456, 8
        %v497 = vmul.u32.u64.compose %v496, %v495
        %v498 = vextract.low.u32 %v497
        %v499 = vextract.high.u32 %v497
        %v500 = vmul.u32.u64.compose %v496, %v491
        %v501 = vextract.low.u32 %v500
        %v502 = vextract.high.u32 %v500
        %v503 = vmul.u32 %v496, %v487
        %v504 = vadd.s32 %v499, %v501
        %vm505 = vc.u32 %v499, %v501
        %v506 = vadd.s32 %v502, 1
        %v507 = vsel %vm505, %v506, %v502
        %v508 = vadd.s32 %v503, %v507
        %v509 = vadd.s32 %v508, 536870912
        %v510 = vshrl.u32 %v509, 30
        %v511 = vshll.u32 %v510, 30
        %v512 = vsub.s32 %v508, %v511
        %vm513 = vcmp.lt.s32.totalorder %v512, 0
        %v514 = vsub.s32 0, %v512
        %v515 = vsel %vm513, %v514, %v512
        %v516 = vclz %v515
        %v517 = vsub.s32 %v516, 2
        %vm518 = vcmp.gt.s32.totalorder 0, %v517
        %v519 = vsel %vm518, 0, %v517
        %v520 = vsub.s32 32, %v519
        %v521 = vshll.u32 %v512, %v519
        %v522 = vshrl.u32 %v504, %v520
        %v523 = vor.u32 %v521, %v522
        %v524 = vsub.s32 4294967266, %v519
        %v525 = vadd.s32 %v524, 127
        %v526 = vshll.u32 %v525, 23
        %v527 = vor.u32 4788187, %v526
        %v528 = vand.u32 2147483647, %v527
        %v530 = vcvt.s32.f32 %v523
        %v531 = vmul.f32 %v530, %v528
        %v532 = vxor.u32 %v531, 2147483648
        %v533 = vsel %vm450, %v532, %v531
        %v534 = vsub.s32 4, %v510
        %v535 = vsel %vm450, %v534, %v510
        %v536 = vsel %vm449, %v343, %v533
        %v537 = vsel %vm449, 0, %v535
        %v538 = vcosq.f32.pop %v536
        %v539 = vsinq.f32.pop %v536
        %vm540 = vweird.f32 %v343
        %v541 = vand.u32 %v537, 3
        %vm542 = vcmp.lt.s32.totalorder %v541, 2
        %vm543 = vcmp.eq.s32.totalorder %v541, 0
        %v544 = vxor.u32 %v539, 2147483648
        %v545 = vsel %vm543, %v538, %v544
        %vm546 = vcmp.eq.s32.totalorder %v541, 2
        %v547 = vxor.u32 %v538, 2147483648
        %v548 = vsel %vm546, %v547, %v539
        %v549 = vsel %vm542, %v545, %v548
        %v550 = vsel %vm540, nan, %v549
        %v551 = vand.u32 2147483647, %v344
        %vm552 = vcmp.le.f32.partialorder %v551, 0.7853982
        %vm553 = vcmp.lt.s32.totalorder %v344, 0
        %v554 = vand.u32 %v344, 2139095040
        %v555 = vshrl.u32 %v554, 23
        %v556 = vsub.s32 %v555, 127
        %v557 = vand.u32 2147483647, %v344
        %v558 = vand.u32 %v557, 8388607
        %v559 = vor.u32 %v558, 8388608
        %v560 = vsub.s32 0, %v559
        %v561 = vadd.s32 %v556, 1
        %vm562 = vcmp.gt.s32.totalorder %v561, 0
        %v563 = vsel %vm562, %v561, 0
        %v564 = vshrl.u32 %v563, 5
        %v565 = vand.u32 %v563, 31
        %v566 = vsub.s32 32, %v565
        %v567 = vshrl.u32 683565275, %v566
        %v568 = vshll.u32 683565275, %v565
        %v569 = vshrl.u32 2475754826, %v566
        %v570 = vor.u32 %v568, %v569
        %v571 = vshll.u32 2475754826, %v565
        %v572 = vshrl.u32 2131351028, %v566
        %v573 = vor.u32 %v571, %v572
        %v574 = vshll.u32 2131351028, %v565
        %v575 = vshrl.u32 2102212464, %v566
        %v576 = vor.u32 %v574, %v575
        %v577 = vshll.u32 2102212464, %v565
        %v578 = vshrl.u32 920167782, %v566
        %v579 = vor.u32 %v577, %v578
        %v580 = vshll.u32 920167782, %v565
        %v581 = vshrl.u32 1326507024, %v566
        %v582 = vor.u32 %v580, %v581
        %vm583 = vcmp.lt.s32.totalorder %v564, 1
        %vm584 = vcmp.lt.s32.totalorder %v564, 2
        %vm585 = vcmp.lt.s32.totalorder %v564, 3
        %vm586 = vcmp.lt.s32.totalorder %v564, 4
        %v587 = vsel %vm583, %v567, %v570
        %v588 = vsel %vm586, %v576, 2102212464
        %v589 = vsel %vm585, %v573, %v588
        %v590 = vsel %vm584, %v587, %v589
        %v591 = vsel %vm583, %v570, %v573
        %v592 = vsel %vm586, %v579, 920167782
        %v593 = vsel %vm585, %v576, %v592
        %v594 = vsel %vm584, %v591, %v593
        %v595 = vsel %vm583, %v573, %v576
        %v596 = vsel %vm586, %v582, 1326507024
        %v597 = vsel %vm585, %v579, %v596
        %v598 = vsel %vm584, %v595, %v597
        %v599 = vshll.u32 %v559, 8
        %v600 = vmul.u32.u64.compose %v599, %v598
        %v601 = vextract.low.u32 %v600
        %v602 = vextract.high.u32 %v600
        %v603 = vmul.u32.u64.compose %v599, %v594
        %v604 = vextract.low.u32 %v603
        %v605 = vextract.high.u32 %v603
        %v606 = vmul.u32 %v599, %v590
        %v607 = vadd.s32 %v602, %v604
        %vm608 = vc.u32 %v602, %v604
        %v609 = vadd.s32 %v605, 1
        %v610 = vsel %vm608, %v609, %v605
        %v611 = vadd.s32 %v606, %v610
        %v612 = vadd.s32 %v611, 536870912
        %v613 = vshrl.u32 %v612, 30
        %v614 = vshll.u32 %v613, 30
        %v615 = vsub.s32 %v611, %v614
        %vm616 = vcmp.lt.s32.totalorder %v615, 0
        %v617 = vsub.s32 0, %v615
        %v618 = vsel %vm616, %v617, %v615
        %v619 = vclz %v618
        %v620 = vsub.s32 %v619, 2
        %vm621 = vcmp.gt.s32.totalorder 0, %v620
        %v622 = vsel %vm621, 0, %v620
        %v623 = vsub.s32 32, %v622
        %v624 = vshll.u32 %v615, %v622
        %v625 = vshrl.u32 %v607, %v623
        %v626 = vor.u32 %v624, %v625
        %v627 = vsub.s32 4294967266, %v622
        %v628 = vadd.s32 %v627, 127
        %v629 = vshll.u32 %v628, 23
        %v630 = vor.u32 4788187, %v629
        %v631 = vand.u32 2147483647, %v630
        %v633 = vcvt.s32.f32 %v626
        %v634 = vmul.f32 %v633, %v631
        %v635 = vxor.u32 %v634, 2147483648
        %v636 = vsel %vm553, %v635, %v634
        %v637 = vsub.s32 4, %v613
        %v638 = vsel %vm553, %v637, %v613
        %v639 = vsel %vm552, %v344, %v636
        %v640 = vsel %vm552, 0, %v638
        %v641 = vcosq.f32.pop %v639
        %v642 = vsinq.f32.pop %v639
        %vm643 = vweird.f32 %v344
        %v644 = vand.u32 %v640, 3
        %vm645 = vcmp.lt.s32.totalorder %v644, 2
        %vm646 = vcmp.eq.s32.totalorder %v644, 0
        %v647 = vxor.u32 %v642, 2147483648
        %v648 = vsel %vm646, %v641, %v647
        %vm649 = vcmp.eq.s32.totalorder %v644, 2
        %v650 = vxor.u32 %v641, 2147483648
        %v651 = vsel %vm649, %v650, %v642
        %v652 = vsel %vm645, %v648, %v651
        %v653 = vsel %vm643, nan, %v652
        %654 = vst [vmem:[%s145] sm:$0xff] %v447
        %655 = vst [vmem:[%s145 + $0x8] sm:$0xff] %v550
        %656 = vst [vmem:[%s145 + $0x10] sm:$0xff] %v653
        %v657 = vand.u32 2147483647, %v342
        %vm658 = vcmp.le.f32.partialorder %v657, 0.7853982
        %vm659 = vcmp.lt.s32.totalorder %v342, 0
        %v660 = vand.u32 %v342, 2139095040
        %v661 = vshrl.u32 %v660, 23
        %v662 = vsub.s32 %v661, 127
        %v663 = vand.u32 2147483647, %v342
        %v664 = vand.u32 %v663, 8388607
        %v665 = vor.u32 %v664, 8388608
        %v666 = vsub.s32 0, %v665
        %v667 = vadd.s32 %v662, 1
        %vm668 = vcmp.gt.s32.totalorder %v667, 0
        %v669 = vsel %vm668, %v667, 0
        %v670 = vshrl.u32 %v669, 5
        %v671 = vand.u32 %v669, 31
        %v672 = vsub.s32 32, %v671
        %v673 = vshrl.u32 683565275, %v672
        %v674 = vshll.u32 683565275, %v671
        %v675 = vshrl.u32 2475754826, %v672
        %v676 = vor.u32 %v674, %v675
        %v677 = vshll.u32 2475754826, %v671
        %v678 = vshrl.u32 2131351028, %v672
        %v679 = vor.u32 %v677, %v678
        %v680 = vshll.u32 2131351028, %v671
        %v681 = vshrl.u32 2102212464, %v672
        %v682 = vor.u32 %v680, %v681
        %v683 = vshll.u32 2102212464, %v671
        %v684 = vshrl.u32 920167782, %v672
        %v685 = vor.u32 %v683, %v684
        %v686 = vshll.u32 920167782, %v671
        %v687 = vshrl.u32 1326507024, %v672
        %v688 = vor.u32 %v686, %v687
        %vm689 = vcmp.lt.s32.totalorder %v670, 1
        %vm690 = vcmp.lt.s32.totalorder %v670, 2
        %vm691 = vcmp.lt.s32.totalorder %v670, 3
        %vm692 = vcmp.lt.s32.totalorder %v670, 4
        %v693 = vsel %vm689, %v673, %v676
        %v694 = vsel %vm692, %v682, 2102212464
        %v695 = vsel %vm691, %v679, %v694
        %v696 = vsel %vm690, %v693, %v695
        %v697 = vsel %vm689, %v676, %v679
        %v698 = vsel %vm692, %v685, 920167782
        %v699 = vsel %vm691, %v682, %v698
        %v700 = vsel %vm690, %v697, %v699
        %v701 = vsel %vm689, %v679, %v682
        %v702 = vsel %vm692, %v688, 1326507024
        %v703 = vsel %vm691, %v685, %v702
        %v704 = vsel %vm690, %v701, %v703
        %v705 = vshll.u32 %v665, 8
        %v706 = vmul.u32.u64.compose %v705, %v704
        %v707 = vextract.low.u32 %v706
        %v708 = vextract.high.u32 %v706
        %v709 = vmul.u32.u64.compose %v705, %v700
        %v710 = vextract.low.u32 %v709
        %v711 = vextract.high.u32 %v709
        %v712 = vmul.u32 %v705, %v696
        %v713 = vadd.s32 %v708, %v710
        %vm714 = vc.u32 %v708, %v710
        %v715 = vadd.s32 %v711, 1
        %v716 = vsel %vm714, %v715, %v711
        %v717 = vadd.s32 %v712, %v716
        %v718 = vadd.s32 %v717, 536870912
        %v719 = vshrl.u32 %v718, 30
        %v720 = vshll.u32 %v719, 30
        %v721 = vsub.s32 %v717, %v720
        %vm722 = vcmp.lt.s32.totalorder %v721, 0
        %v723 = vsub.s32 0, %v721
        %v724 = vsel %vm722, %v723, %v721
        %v725 = vclz %v724
        %v726 = vsub.s32 %v725, 2
        %vm727 = vcmp.gt.s32.totalorder 0, %v726
        %v728 = vsel %vm727, 0, %v726
        %v729 = vsub.s32 32, %v728
        %v730 = vshll.u32 %v721, %v728
        %v731 = vshrl.u32 %v713, %v729
        %v732 = vor.u32 %v730, %v731
        %v733 = vsub.s32 4294967266, %v728
        %v734 = vadd.s32 %v733, 127
        %v735 = vshll.u32 %v734, 23
        %v736 = vor.u32 4788187, %v735
        %v737 = vand.u32 2147483647, %v736
        %v739 = vcvt.s32.f32 %v732
        %v740 = vmul.f32 %v739, %v737
        %v741 = vxor.u32 %v740, 2147483648
        %v742 = vsel %vm659, %v741, %v740
        %v743 = vsub.s32 4, %v719
        %v744 = vsel %vm659, %v743, %v719
        %v745 = vsel %vm658, %v342, %v742
        %v746 = vsel %vm658, 0, %v744
        %v747 = vcosq.f32.pop %v745
        %v748 = vsinq.f32.pop %v745
        %vm749 = vweird.f32 %v342
        %v750 = vadd.s32 %v746, 3
        %v751 = vand.u32 %v750, 3
        %vm752 = vcmp.lt.s32.totalorder %v751, 2
        %vm753 = vcmp.eq.s32.totalorder %v751, 0
        %v754 = vxor.u32 %v748, 2147483648
        %v755 = vsel %vm753, %v747, %v754
        %vm756 = vcmp.eq.s32.totalorder %v751, 2
        %v757 = vxor.u32 %v747, 2147483648
        %v758 = vsel %vm756, %v757, %v748
        %v759 = vsel %vm752, %v755, %v758
        %v760 = vsel %vm749, nan, %v759
        %v761 = vand.u32 2147483647, %v343
        %vm762 = vcmp.le.f32.partialorder %v761, 0.7853982
        %vm763 = vcmp.lt.s32.totalorder %v343, 0
        %v764 = vand.u32 %v343, 2139095040
        %v765 = vshrl.u32 %v764, 23
        %v766 = vsub.s32 %v765, 127
        %v767 = vand.u32 2147483647, %v343
        %v768 = vand.u32 %v767, 8388607
        %v769 = vor.u32 %v768, 8388608
        %v770 = vsub.s32 0, %v769
        %v771 = vadd.s32 %v766, 1
        %vm772 = vcmp.gt.s32.totalorder %v771, 0
        %v773 = vsel %vm772, %v771, 0
        %v774 = vshrl.u32 %v773, 5
        %v775 = vand.u32 %v773, 31
        %v776 = vsub.s32 32, %v775
        %v777 = vshrl.u32 683565275, %v776
        %v778 = vshll.u32 683565275, %v775
        %v779 = vshrl.u32 2475754826, %v776
        %v780 = vor.u32 %v778, %v779
        %v781 = vshll.u32 2475754826, %v775
        %v782 = vshrl.u32 2131351028, %v776
        %v783 = vor.u32 %v781, %v782
        %v784 = vshll.u32 2131351028, %v775
        %v785 = vshrl.u32 2102212464, %v776
        %v786 = vor.u32 %v784, %v785
        %v787 = vshll.u32 2102212464, %v775
        %v788 = vshrl.u32 920167782, %v776
        %v789 = vor.u32 %v787, %v788
        %v790 = vshll.u32 920167782, %v775
        %v791 = vshrl.u32 1326507024, %v776
        %v792 = vor.u32 %v790, %v791
        %vm793 = vcmp.lt.s32.totalorder %v774, 1
        %vm794 = vcmp.lt.s32.totalorder %v774, 2
        %vm795 = vcmp.lt.s32.totalorder %v774, 3
        %vm796 = vcmp.lt.s32.totalorder %v774, 4
        %v797 = vsel %vm793, %v777, %v780
        %v798 = vsel %vm796, %v786, 2102212464
        %v799 = vsel %vm795, %v783, %v798
        %v800 = vsel %vm794, %v797, %v799
        %v801 = vsel %vm793, %v780, %v783
        %v802 = vsel %vm796, %v789, 920167782
        %v803 = vsel %vm795, %v786, %v802
        %v804 = vsel %vm794, %v801, %v803
        %v805 = vsel %vm793, %v783, %v786
        %v806 = vsel %vm796, %v792, 1326507024
        %v807 = vsel %vm795, %v789, %v806
        %v808 = vsel %vm794, %v805, %v807
        %v809 = vshll.u32 %v769, 8
        %v810 = vmul.u32.u64.compose %v809, %v808
        %v811 = vextract.low.u32 %v810
        %v812 = vextract.high.u32 %v810
        %v813 = vmul.u32.u64.compose %v809, %v804
        %v814 = vextract.low.u32 %v813
        %v815 = vextract.high.u32 %v813
        %v816 = vmul.u32 %v809, %v800
        %v817 = vadd.s32 %v812, %v814
        %vm818 = vc.u32 %v812, %v814
        %v819 = vadd.s32 %v815, 1
        %v820 = vsel %vm818, %v819, %v815
        %v821 = vadd.s32 %v816, %v820
        %v822 = vadd.s32 %v821, 536870912
        %v823 = vshrl.u32 %v822, 30
        %v824 = vshll.u32 %v823, 30
        %v825 = vsub.s32 %v821, %v824
        %vm826 = vcmp.lt.s32.totalorder %v825, 0
        %v827 = vsub.s32 0, %v825
        %v828 = vsel %vm826, %v827, %v825
        %v829 = vclz %v828
        %v830 = vsub.s32 %v829, 2
        %vm831 = vcmp.gt.s32.totalorder 0, %v830
        %v832 = vsel %vm831, 0, %v830
        %v833 = vsub.s32 32, %v832
        %v834 = vshll.u32 %v825, %v832
        %v835 = vshrl.u32 %v817, %v833
        %v836 = vor.u32 %v834, %v835
        %v837 = vsub.s32 4294967266, %v832
        %v838 = vadd.s32 %v837, 127
        %v839 = vshll.u32 %v838, 23
        %v840 = vor.u32 4788187, %v839
        %v841 = vand.u32 2147483647, %v840
        %v843 = vcvt.s32.f32 %v836
        %v844 = vmul.f32 %v843, %v841
        %v845 = vxor.u32 %v844, 2147483648
        %v846 = vsel %vm763, %v845, %v844
        %v847 = vsub.s32 4, %v823
        %v848 = vsel %vm763, %v847, %v823
        %v849 = vsel %vm762, %v343, %v846
        %v850 = vsel %vm762, 0, %v848
        %v851 = vcosq.f32.pop %v849
        %v852 = vsinq.f32.pop %v849
        %vm853 = vweird.f32 %v343
        %v854 = vadd.s32 %v850, 3
        %v855 = vand.u32 %v854, 3
        %vm856 = vcmp.lt.s32.totalorder %v855, 2
        %vm857 = vcmp.eq.s32.totalorder %v855, 0
        %v858 = vxor.u32 %v852, 2147483648
        %v859 = vsel %vm857, %v851, %v858
        %vm860 = vcmp.eq.s32.totalorder %v855, 2
        %v861 = vxor.u32 %v851, 2147483648
        %v862 = vsel %vm860, %v861, %v852
        %v863 = vsel %vm856, %v859, %v862
        %v864 = vsel %vm853, nan, %v863
        %v865 = vand.u32 2147483647, %v344
        %vm866 = vcmp.le.f32.partialorder %v865, 0.7853982
        %vm867 = vcmp.lt.s32.totalorder %v344, 0
        %v868 = vand.u32 %v344, 2139095040
        %v869 = vshrl.u32 %v868, 23
        %v870 = vsub.s32 %v869, 127
        %v871 = vand.u32 2147483647, %v344
        %v872 = vand.u32 %v871, 8388607
        %v873 = vor.u32 %v872, 8388608
        %v874 = vsub.s32 0, %v873
        %v875 = vadd.s32 %v870, 1
        %vm876 = vcmp.gt.s32.totalorder %v875, 0
        %v877 = vsel %vm876, %v875, 0
        %v878 = vshrl.u32 %v877, 5
        %v879 = vand.u32 %v877, 31
        %v880 = vsub.s32 32, %v879
        %v881 = vshrl.u32 683565275, %v880
        %v882 = vshll.u32 683565275, %v879
        %v883 = vshrl.u32 2475754826, %v880
        %v884 = vor.u32 %v882, %v883
        %v885 = vshll.u32 2475754826, %v879
        %v886 = vshrl.u32 2131351028, %v880
        %v887 = vor.u32 %v885, %v886
        %v888 = vshll.u32 2131351028, %v879
        %v889 = vshrl.u32 2102212464, %v880
        %v890 = vor.u32 %v888, %v889
        %v891 = vshll.u32 2102212464, %v879
        %v892 = vshrl.u32 920167782, %v880
        %v893 = vor.u32 %v891, %v892
        %v894 = vshll.u32 920167782, %v879
        %v895 = vshrl.u32 1326507024, %v880
        %v896 = vor.u32 %v894, %v895
        %vm897 = vcmp.lt.s32.totalorder %v878, 1
        %vm898 = vcmp.lt.s32.totalorder %v878, 2
        %vm899 = vcmp.lt.s32.totalorder %v878, 3
        %vm900 = vcmp.lt.s32.totalorder %v878, 4
        %v901 = vsel %vm897, %v881, %v884
        %v902 = vsel %vm900, %v890, 2102212464
        %v903 = vsel %vm899, %v887, %v902
        %v904 = vsel %vm898, %v901, %v903
        %v905 = vsel %vm897, %v884, %v887
        %v906 = vsel %vm900, %v893, 920167782
        %v907 = vsel %vm899, %v890, %v906
        %v908 = vsel %vm898, %v905, %v907
        %v909 = vsel %vm897, %v887, %v890
        %v910 = vsel %vm900, %v896, 1326507024
        %v911 = vsel %vm899, %v893, %v910
        %v912 = vsel %vm898, %v909, %v911
        %v913 = vshll.u32 %v873, 8
        %v914 = vmul.u32.u64.compose %v913, %v912
        %v915 = vextract.low.u32 %v914
        %v916 = vextract.high.u32 %v914
        %v917 = vmul.u32.u64.compose %v913, %v908
        %v918 = vextract.low.u32 %v917
        %v919 = vextract.high.u32 %v917
        %v920 = vmul.u32 %v913, %v904
        %v921 = vadd.s32 %v916, %v918
        %vm922 = vc.u32 %v916, %v918
        %v923 = vadd.s32 %v919, 1
        %v924 = vsel %vm922, %v923, %v919
        %v925 = vadd.s32 %v920, %v924
        %v926 = vadd.s32 %v925, 536870912
        %v927 = vshrl.u32 %v926, 30
        %v928 = vshll.u32 %v927, 30
        %v929 = vsub.s32 %v925, %v928
        %vm930 = vcmp.lt.s32.totalorder %v929, 0
        %v931 = vsub.s32 0, %v929
        %v932 = vsel %vm930, %v931, %v929
        %v933 = vclz %v932
        %v934 = vsub.s32 %v933, 2
        %vm935 = vcmp.gt.s32.totalorder 0, %v934
        %v936 = vsel %vm935, 0, %v934
        %v937 = vsub.s32 32, %v936
        %v938 = vshll.u32 %v929, %v936
        %v939 = vshrl.u32 %v921, %v937
        %v940 = vor.u32 %v938, %v939
        %v941 = vsub.s32 4294967266, %v936
        %v942 = vadd.s32 %v941, 127
        %v943 = vshll.u32 %v942, 23
        %v944 = vor.u32 4788187, %v943
        %v945 = vand.u32 2147483647, %v944
        %v947 = vcvt.s32.f32 %v940
        %v948 = vmul.f32 %v947, %v945
        %v949 = vxor.u32 %v948, 2147483648
        %v950 = vsel %vm867, %v949, %v948
        %v951 = vsub.s32 4, %v927
        %v952 = vsel %vm867, %v951, %v927
        %v953 = vsel %vm866, %v344, %v950
        %v954 = vsel %vm866, 0, %v952
        %v955 = vcosq.f32.pop %v953
        %v956 = vsinq.f32.pop %v953
        %vm957 = vweird.f32 %v344
        %v958 = vadd.s32 %v954, 3
        %v959 = vand.u32 %v958, 3
        %vm960 = vcmp.lt.s32.totalorder %v959, 2
        %vm961 = vcmp.eq.s32.totalorder %v959, 0
        %v962 = vxor.u32 %v956, 2147483648
        %v963 = vsel %vm961, %v955, %v962
        %vm964 = vcmp.eq.s32.totalorder %v959, 2
        %v965 = vxor.u32 %v955, 2147483648
        %v966 = vsel %vm964, %v965, %v956
        %v967 = vsel %vm960, %v963, %v966
        %v968 = vsel %vm957, nan, %v967
        %s969 = scalar_lea.vmem %s145, 24 [#allocation2]
        %970 = vst [vmem:[%s969] sm:$0xff] %v760
        %971 = vst [vmem:[%s969 + $0x8] sm:$0xff] %v864
        %972 = vst [vmem:[%s969 + $0x10] sm:$0xff] %v968
        %s973 = sand.u32 %s68, 1
        %s974 = sand.u32 %s68, 1
        %s975 = smul.addr %s974, 48
        %s976 = scalar_lea.vmem [#allocation2], %s975
        // Predicated region
        $region29: #{tpu_custom_call.1} parent=27 // pred_check
          %p977 = pneg %p78
        $region30: #{tpu_custom_call.1} parent=27 // pred_check_branch
          %979 = sbr.rel (%p977) target = $region32
        $region31: #{tpu_custom_call.1} parent=27 // pred_region
          %s980 = smul.u32 3, %s13
          %s981 = ssub.s32 5, %s980
          %p982 = scmp.lt.s32.totalorder %s981, 3
          %s983 = scalar_select %p982, %s981, 3
          %s984 = smul.u32 256, %s983
          %p985 = scmp.ne.s32.totalorder 0, %s984
          %s986 = smul.addr %s980, 8
          %s987 = scalar_lea.vmem %s2, %s986
          // Predicated region
          $region33: #{tpu_custom_call.1} parent=31 // pred_check
            %p988 = pneg %p985
          $region34: #{tpu_custom_call.1} parent=31 // pred_check_branch
            %990 = sbr.rel (%p988) target = $region36
          $region35: #{tpu_custom_call.1} parent=31 // pred_region
            // Predicated region
            $region37: #{tpu_custom_call.1} parent=35 // pred_check
              _
            $region38: #{tpu_custom_call.1} parent=35 // pred_check_branch
              %992 = sbr.rel (0) target = $region40
            $region39: #{tpu_custom_call.1} parent=35 // pred_region
              // Predicated region
              $region59: #{tpu_custom_call.1} parent=39 // pred_check
                _
              $region60: #{tpu_custom_call.1} parent=39 // pred_check_branch
                %1054 = sbr.rel (0) target = $region62
              $region61: #{tpu_custom_call.1} parent=39 // pred_region
                %s1055 = sdiv.u32.pop %s983, 3
                %s1056 = srem.u32.pop %s983, 3
                // While loop
                $region63: #{tpu_custom_call.1} parent=61 // loop_pre_header
                  _
                $region64: #{tpu_custom_call.1} parent=61 // loop_header
                  %s1058 = sphi 0, %s1060
                  %p1059 = scmp.ge.s32.totalorder %s1058, %s1055
                  %s1063 = sphi 0, %s1080
                  %s1064 = sphi %s976, %s1083
                  %s1065 = sphi %s987, %s1084
                $region65: #{tpu_custom_call.1} parent=61 // loop_header_branch
                  %1062 = sbr.rel (%p1059) target = $region69
                $region66: #{tpu_custom_call.1} parent=61 // loop_body
                  %v1066 = vld [vmem:[%s1064] sm:$0xff]
                  %1067 = vst [vmem:[%s1065] sm:$0xff] %v1066
                  %v1068 = vld [vmem:[%s1064 + $0x8] sm:$0xff]
                  %1069 = vst [vmem:[%s1065 + $0x8] sm:$0xff] %v1068
                  %v1070 = vld [vmem:[%s1064 + $0x10] sm:$0xff]
                  %1071 = vst [vmem:[%s1065 + $0x10] sm:$0xff] %v1070
                  %v1072 = vld [vmem:[%s1064 + $0x18] sm:$0xff]
                  %1073 = vst [vmem:[%s1065 + $0x28] sm:$0xff] %v1072
                  %v1074 = vld [vmem:[%s1064 + $0x20] sm:$0xff]
                  %1075 = vst [vmem:[%s1065 + $0x30] sm:$0xff] %v1074
                  %v1076 = vld [vmem:[%s1064 + $0x28] sm:$0xff]
                  %1077 = vst [vmem:[%s1065 + $0x38] sm:$0xff] %v1076
                  %s1078 = sadd.s32 1, %s1063
                  %p1079 = scmp.ge.s32.totalorder %s1078, %s1055
                  %s1080 = scalar_select %p1079, 0, %s1078
                  %s1081 = smul.u32 %s1080, 24
                  %s1082 = smul.u32 %s1080, 24
                  %s1083 = scalar_lea.vmem %s976, %s1081 [#allocation2]
                  %s1084 = scalar_lea.vmem %s987, %s1082
                $region67: #{tpu_custom_call.1} parent=61 // loop_footer
                  %s1060 = sadd.s32 %s1058, 1
                $region68: #{tpu_custom_call.1} parent=61 // loop_footer_branch
                  %1057 = sbr.rel target = $region64
                $region69: #{tpu_custom_call.1} parent=61 // loop_exit
                  _
                %s1085 = sdiv.u32.pop %s983, 3
                %s1086 = srem.u32.pop %s983, 3
                %s1087 = smul.u32 %s1085, 3
                %s1088 = smul.u32 8, %s1087
                %s1089 = scalar_lea.vmem %s976, %s1088 [#allocation2]
                %s1090 = smul.u32 8, %s1087
                %s1091 = scalar_lea.vmem %s987, %s1090
                // While loop
                $region70: #{tpu_custom_call.1} parent=61 // loop_pre_header
                  _
                $region71: #{tpu_custom_call.1} parent=61 // loop_header
                  %s1093 = sphi 0, %s1095
                  %p1094 = scmp.ge.s32.totalorder %s1093, %s1086
                  %s1098 = sphi 0, %s1107
                  %s1099 = sphi %s1089, %s1110
                  %s1100 = sphi %s1091, %s1111
                $region72: #{tpu_custom_call.1} parent=61 // loop_header_branch
                  %1097 = sbr.rel (%p1094) target = $region76
                $region73: #{tpu_custom_call.1} parent=61 // loop_body
                  %v1101 = vld [vmem:[%s1099] sm:$0xff]
                  %1102 = vst [vmem:[%s1100] sm:$0xff] %v1101
                  %v1103 = vld [vmem:[%s1099 + $0x18] sm:$0xff]
                  %1104 = vst [vmem:[%s1100 + $0x28] sm:$0xff] %v1103
                  %s1105 = sadd.s32 1, %s1098
                  %p1106 = scmp.ge.s32.totalorder %s1105, %s1086
                  %s1107 = scalar_select %p1106, 0, %s1105
                  %s1108 = smul.u32 %s1107, 8
                  %s1109 = smul.u32 %s1107, 8
                  %s1110 = scalar_lea.vmem %s1089, %s1108 [#allocation2]
                  %s1111 = scalar_lea.vmem %s1091, %s1109
                $region74: #{tpu_custom_call.1} parent=61 // loop_footer
                  %s1095 = sadd.s32 %s1093, 1
                $region75: #{tpu_custom_call.1} parent=61 // loop_footer_branch
                  %1092 = sbr.rel target = $region71
                $region76: #{tpu_custom_call.1} parent=61 // loop_exit
                  _
              $region62: #{tpu_custom_call.1} parent=39 // pred_fallthru
                _
              // Predicated region
              $region77: #{tpu_custom_call.1} parent=39 // pred_check
                _
              $region78: #{tpu_custom_call.1} parent=39 // pred_check_branch
                %1113 = sbr.rel target = $region80
              $region79: #{tpu_custom_call.1} parent=39 // pred_region
                _
              $region80: #{tpu_custom_call.1} parent=39 // pred_fallthru
                _
            $region40: #{tpu_custom_call.1} parent=35 // pred_fallthru
              _
            // Predicated region
            $region41: #{tpu_custom_call.1} parent=35 // pred_check
              _
            $region42: #{tpu_custom_call.1} parent=35 // pred_check_branch
              %994 = sbr.rel target = $region44
            $region43: #{tpu_custom_call.1} parent=35 // pred_region
              %s996 = sdiv.u32.pop %s983, 3
              %s997 = srem.u32.pop %s983, 3
              // While loop
              $region45: #{tpu_custom_call.1} parent=43 // loop_pre_header
                _
              $region46: #{tpu_custom_call.1} parent=43 // loop_header
                %s999 = sphi 0, %s1001
                %p1000 = scmp.ge.s32.totalorder %s999, %s996
                %s1004 = sphi 0, %s1021
                %s1005 = sphi %s976, %s1024
                %s1006 = sphi %s987, %s1025
              $region47: #{tpu_custom_call.1} parent=43 // loop_header_branch
                %1003 = sbr.rel (%p1000) target = $region51
              $region48: #{tpu_custom_call.1} parent=43 // loop_body
                %v1007 = vld [vmem:[%s1005] sm:$0xff]
                %1008 = vst [vmem:[%s1006] sm:$0xff] %v1007
                %v1009 = vld [vmem:[%s1005 + $0x8] sm:$0xff]
                %1010 = vst [vmem:[%s1006 + $0x8] sm:$0xff] %v1009
                %v1011 = vld [vmem:[%s1005 + $0x10] sm:$0xff]
                %1012 = vst [vmem:[%s1006 + $0x10] sm:$0xff] %v1011
                %v1013 = vld [vmem:[%s1005 + $0x18] sm:$0xff]
                %1014 = vst [vmem:[%s1006 + $0x28] sm:$0xff] %v1013
                %v1015 = vld [vmem:[%s1005 + $0x20] sm:$0xff]
                %1016 = vst [vmem:[%s1006 + $0x30] sm:$0xff] %v1015
                %v1017 = vld [vmem:[%s1005 + $0x28] sm:$0xff]
                %1018 = vst [vmem:[%s1006 + $0x38] sm:$0xff] %v1017
                %s1019 = sadd.s32 1, %s1004
                %p1020 = scmp.ge.s32.totalorder %s1019, %s996
                %s1021 = scalar_select %p1020, 0, %s1019
                %s1022 = smul.u32 %s1021, 24
                %s1023 = smul.u32 %s1021, 24
                %s1024 = scalar_lea.vmem %s976, %s1022 [#allocation2]
                %s1025 = scalar_lea.vmem %s987, %s1023
              $region49: #{tpu_custom_call.1} parent=43 // loop_footer
                %s1001 = sadd.s32 %s999, 1
              $region50: #{tpu_custom_call.1} parent=43 // loop_footer_branch
                %998 = sbr.rel target = $region46
              $region51: #{tpu_custom_call.1} parent=43 // loop_exit
                _
              %s1026 = sdiv.u32.pop %s983, 3
              %s1027 = srem.u32.pop %s983, 3
              %s1028 = smul.u32 %s1026, 3
              %s1029 = smul.u32 8, %s1028
              %s1030 = scalar_lea.vmem %s976, %s1029 [#allocation2]
              %s1031 = smul.u32 8, %s1028
              %s1032 = scalar_lea.vmem %s987, %s1031
              // While loop
              $region52: #{tpu_custom_call.1} parent=43 // loop_pre_header
                _
              $region53: #{tpu_custom_call.1} parent=43 // loop_header
                %s1034 = sphi 0, %s1036
                %p1035 = scmp.ge.s32.totalorder %s1034, %s1027
                %s1039 = sphi 0, %s1048
                %s1040 = sphi %s1030, %s1051
                %s1041 = sphi %s1032, %s1052
              $region54: #{tpu_custom_call.1} parent=43 // loop_header_branch
                %1038 = sbr.rel (%p1035) target = $region58
              $region55: #{tpu_custom_call.1} parent=43 // loop_body
                %v1042 = vld [vmem:[%s1040] sm:$0xff]
                %1043 = vst [vmem:[%s1041] sm:$0xff] %v1042
                %v1044 = vld [vmem:[%s1040 + $0x18] sm:$0xff]
                %1045 = vst [vmem:[%s1041 + $0x28] sm:$0xff] %v1044
                %s1046 = sadd.s32 1, %s1039
                %p1047 = scmp.ge.s32.totalorder %s1046, %s1027
                %s1048 = scalar_select %p1047, 0, %s1046
                %s1049 = smul.u32 %s1048, 8
                %s1050 = smul.u32 %s1048, 8
                %s1051 = scalar_lea.vmem %s1030, %s1049 [#allocation2]
                %s1052 = scalar_lea.vmem %s1032, %s1050
              $region56: #{tpu_custom_call.1} parent=43 // loop_footer
                %s1036 = sadd.s32 %s1034, 1
              $region57: #{tpu_custom_call.1} parent=43 // loop_footer_branch
                %1033 = sbr.rel target = $region53
              $region58: #{tpu_custom_call.1} parent=43 // loop_exit
                _
            $region44: #{tpu_custom_call.1} parent=35 // pred_fallthru
              _
          $region36: #{tpu_custom_call.1} parent=31 // pred_fallthru
            _
          %1114 = vnop
        $region32: #{tpu_custom_call.1} parent=27 // pred_fallthru
          _
      $region28: #{tpu_custom_call.1} parent=5 // pred_fallthru
        _
      %p1115 = scmp.le.s32.totalorder 2, %s8
      // Predicated region
      $region81: #{tpu_custom_call.1} parent=5 // pred_check
        %p1116 = pneg %p1115
      $region82: #{tpu_custom_call.1} parent=5 // pred_check_branch
        %1118 = sbr.rel (%p1116) target = $region84
      $region83: #{tpu_custom_call.1} parent=5 // pred_region
        %s1119 = ssub.s32 %s8, 2
        // Predicated region
        $region85: #{tpu_custom_call.1} parent=83 // pred_check
          %p1120 = pneg %p84
        $region86: #{tpu_custom_call.1} parent=83 // pred_check_branch
          %1122 = sbr.rel (%p1120) target = $region88
        $region87: #{tpu_custom_call.1} parent=83 // pred_region
          %s1123 = sand.u32 %s69, 1
          %s1124 = sand.u32 %s69, 1
          %s1125 = smul.addr %s1124, 48
          %s1126 = scalar_lea.vmem [#allocation2], %s1125
        $region88: #{tpu_custom_call.1} parent=83 // pred_fallthru
          _
      $region84: #{tpu_custom_call.1} parent=5 // pred_fallthru
        _
    $region6: #{tpu_custom_call.1} parent=1 // loop_footer
      %s12 = sadd.s32 1, %s8
    $region7: #{tpu_custom_call.1} parent=1 // loop_footer_branch
      %7 = sbr.rel target = $region3
    $region8: #{tpu_custom_call.1} parent=1 // loop_exit
      _

</llo_original>
